<compile_context>
chip_gen: v7x
topology: tpu7x:2x2x1
jax: 0.10.0
libtpu: 0.0.40
codegen_flags: <defaults>
</compile_context>

<pallas_src>
import math

import jax
import jax.numpy as jnp
from jax.experimental import pallas as pl
from jax.experimental.pallas import tpu as pltpu


def _round_up(x, m):
    return ((x + m - 1) // m) * m


# --------------------------------------------------------------------------
# Kernel A: degree accumulation + rsqrt finalize.
# grid = (num_edge_blocks,), output block (n_pad, 1) resident as accumulator.
# --------------------------------------------------------------------------
def _degree_kernel(row_ref, ew_ref, dinv_ref):
    e = pl.program_id(0)
    n_pad = dinv_ref.shape[0]
    eblk = row_ref.shape[1]

    @pl.when(e == 0)
    def _init():
        dinv_ref[...] = jnp.zeros_like(dinv_ref)

    # weighted one-hot of `row` (f32 so deg stays exact), reduce over the lane
    # (edge) axis -> per-node degree contribution of this edge block.
    iota_n = jax.lax.broadcasted_iota(jnp.int32, (n_pad, eblk), 0)
    contrib = jnp.where(iota_n == row_ref[...], ew_ref[...].astype(jnp.float32), 0.0)
    dinv_ref[...] += jnp.sum(contrib, axis=1, keepdims=True)

    @pl.when(e == pl.num_programs(0) - 1)
    def _finalize():
        deg = dinv_ref[...]
        # deg^-0.5 with the inf->0 guard; rsqrt uses the otherwise-idle EUP slot.
        dinv_ref[...] = jnp.where(deg > 0.0, jax.lax.rsqrt(deg), 0.0)


# --------------------------------------------------------------------------
# Kernel B: fused X@W, normalized gather/scatter aggregation, ReLU.
# grid = (num_cout_blocks, num_edge_blocks); output resident across edge axis.
# --------------------------------------------------------------------------
def _aggregate_kernel(row_ref, col_ref, ew_ref, dinv_ref, x_ref, w_ref,
                      out_ref, y_ref):
    e = pl.program_id(1)
    n_pad = y_ref.shape[0]
    eblk = row_ref.shape[1]

    @pl.when(e == 0)
    def _init():
        # y = diag(deg_inv) @ X @ W[:, cout_block]; cached in VMEM (bf16) and
        # reused for every edge block of this Cout block.
        xw = jnp.dot(x_ref[...], w_ref[...], preferred_element_type=jnp.float32)
        y_ref[...] = (dinv_ref[...] * xw).astype(jnp.bfloat16)
        out_ref[...] = jnp.zeros_like(out_ref)

    iota_n = jax.lax.broadcasted_iota(jnp.int32, (n_pad, eblk), 0)
    row = row_ref[...]                                   # [1, eblk] int32
    col = col_ref[...]                                   # [1, eblk] int32
    one = jnp.bfloat16(1)
    zero = jnp.bfloat16(0)

    # One-hot (node-major [n_pad, eblk]) built from lane-major indices; edge
    # weight is folded directly into the gather-side one-hot (select, no mul).
    r_one = jnp.where(iota_n == row, one, zero)                      # [n_pad, eblk]
    c_one_w = jnp.where(iota_n == col, ew_ref[...], zero)            # [n_pad, eblk]

    # Gather + weight: m[e,:] = ew[e] * y[col[e],:]   (MXU, f32 accumulation)
    m = jax.lax.dot_general(
        c_one_w, y_ref[...],
        dimension_numbers=(((0,), (0,)), ((), ())),
        preferred_element_type=jnp.float32)                          # [eblk, cblk]

    # Scatter-add by row: out[i,:] += sum_{e: row[e]==i} m[e,:]
    out_ref[...] += jnp.dot(r_one, m.astype(jnp.bfloat16),
                            preferred_element_type=jnp.float32)      # [n_pad, cblk]

    @pl.when(e == pl.num_programs(1) - 1)
    def _finalize():
        # Row-side deg_inv scaling + ReLU.
        out_ref[...] = jnp.maximum(dinv_ref[...] * out_ref[...], 0.0)


# --------------------------------------------------------------------------
# Wrapper
# --------------------------------------------------------------------------
def gcn_conv(x, edge_index, weight, edge_weight=None, improved=True,
             edge_block=512, cout_block=128):
    """GCNConv forward. x: [N, Cin], edge_index: [2, E] int, weight: [Cin, Cout]."""
    N, Cin = x.shape
    Cout = weight.shape[1]
    E = edge_index.shape[1]
    dtype = x.dtype

    if edge_weight is None:
        edge_weight = jnp.ones((E,), dtype=dtype)

    # add_self_loops + loop weight (2 because improved=True) — cheap glue
    loop = jnp.arange(N, dtype=jnp.int32)
    row = jnp.concatenate([edge_index[0].astype(jnp.int32), loop])
    col = jnp.concatenate([edge_index[1].astype(jnp.int32), loop])
    loop_w = jnp.full((N,), 2.0 if improved else 1.0, dtype=dtype)
    ew = jnp.concatenate([edge_weight.astype(dtype), loop_w])
    etot = E + N

    # Padded / aligned sizes (lane-dense output, 128-aligned MXU dims).
    n_pad = _round_up(N, 128)
    c_pad = _round_up(Cout, cout_block)
    eblk = min(edge_block, _round_up(etot, 128))
    e_pad = _round_up(etot, eblk)
    num_eblk = e_pad // eblk
    num_jblk = c_pad // cout_block

    # Lane-major edge data; padded edges have ew = 0 (so they contribute nothing).
    row_p = jnp.zeros((1, e_pad), jnp.int32).at[0, :etot].set(row)
    col_p = jnp.zeros((1, e_pad), jnp.int32).at[0, :etot].set(col)
    ew_p = jnp.zeros((1, e_pad), jnp.bfloat16).at[0, :etot].set(ew.astype(jnp.bfloat16))

    # bf16 MXU operands (f32 accumulation inside the kernels).
    x_p = jnp.zeros((n_pad, Cin), jnp.bfloat16).at[:N, :].set(x.astype(jnp.bfloat16))
    w_p = jnp.zeros((Cin, c_pad), jnp.bfloat16).at[:, :Cout].set(
        weight.astype(jnp.bfloat16))

    # ---- Kernel A: deg_inv = deg^-0.5 as a [n_pad, 1] column ----
    deg_inv = pl.pallas_call(
        _degree_kernel,
        out_shape=jax.ShapeDtypeStruct((n_pad, 1), jnp.float32),
        grid_spec=pltpu.PrefetchScalarGridSpec(
            num_scalar_prefetch=0,
            grid=(num_eblk,),
            in_specs=[
                pl.BlockSpec((1, eblk), lambda e: (0, e)),   # row
                pl.BlockSpec((1, eblk), lambda e: (0, e)),   # ew
            ],
            out_specs=pl.BlockSpec((n_pad, 1), lambda e: (0, 0)),
        ),
        compiler_params=pltpu.CompilerParams(
            dimension_semantics=("arbitrary",)),
    )(row_p, ew_p)

    # ---- Kernel B: fused transform + normalized aggregation + ReLU ----
    out_p = pl.pallas_call(
        _aggregate_kernel,
        out_shape=jax.ShapeDtypeStruct((n_pad, c_pad), jnp.float32),
        grid_spec=pltpu.PrefetchScalarGridSpec(
            num_scalar_prefetch=0,
            grid=(num_jblk, num_eblk),
            in_specs=[
                pl.BlockSpec((1, eblk), lambda j, e: (0, e)),            # row
                pl.BlockSpec((1, eblk), lambda j, e: (0, e)),            # col
                pl.BlockSpec((1, eblk), lambda j, e: (0, e)),            # ew
                pl.BlockSpec((n_pad, 1), lambda j, e: (0, 0)),           # deg_inv
                pl.BlockSpec((n_pad, Cin), lambda j, e: (0, 0)),         # x
                pl.BlockSpec((Cin, cout_block), lambda j, e: (0, j)),    # W col block
            ],
            out_specs=pl.BlockSpec((n_pad, cout_block), lambda j, e: (0, j)),
            scratch_shapes=[pltpu.VMEM((n_pad, cout_block), jnp.bfloat16)],
        ),
        compiler_params=pltpu.CompilerParams(
            dimension_semantics=("parallel", "arbitrary"),
            vmem_limit_bytes=64 * 1024 * 1024),
    )(row_p, col_p, ew_p, deg_inv, x_p, w_p)

    return out_p[:N, :Cout].astype(dtype)


def _reference(x, edge_index, weight, improved=True):
    """Plain-JAX f32 reference of the PyTorch forward, for a correctness check."""
    N = x.shape[0]
    E = edge_index.shape[1]
    ew = jnp.ones((E,), x.dtype)
    loop = jnp.arange(N, dtype=jnp.int32)
    row = jnp.concatenate([edge_index[0], loop])
    col = jnp.concatenate([edge_index[1], loop])
    ew = jnp.concatenate([ew, jnp.full((N,), 2.0 if improved else 1.0, x.dtype)])
    deg = jax.ops.segment_sum(ew, row, num_segments=N)
    deg_inv = jnp.where(deg > 0, deg ** -0.5, 0.0)
    norm = deg_inv[row] * ew * deg_inv[col]
    xw = x @ weight
    msgs = norm[:, None] * xw[col]
    out = jax.ops.segment_sum(msgs, row, num_segments=N)
    return jax.nn.relu(out)


if __name__ == "__main__":
    key = jax.random.PRNGKey(0)
    N, Cin, Cout, E = 16, 8, 32, 40

    k_x, k_ei, k_w = jax.random.split(key, 3)
    x = jax.random.normal(k_x, (N, Cin), dtype=jnp.float32)
    edge_index = jax.random.randint(k_ei, (2, E), 0, N, dtype=jnp.int32)

    # glorot init: uniform(-stdv, stdv), stdv = sqrt(6 / (in + out))
    stdv = math.sqrt(6.0 / (Cin + Cout))
    weight = jax.random.uniform(k_w, (Cin, Cout), dtype=jnp.float32,
                                minval=-stdv, maxval=stdv)

    out = gcn_conv(x, edge_index, weight)
    out = jax.block_until_ready(out)

    ref = _reference(x, edge_index, weight)
    assert out.shape == (N, Cout)
    # bf16 MXU operands (per perf review) -> ~0.5% relative error vs f32 reference.
    err = float(jnp.max(jnp.abs(out - ref)))
    assert jnp.allclose(out, ref, atol=2e-2, rtol=2e-2), (
        f"mismatch vs reference (max abs err {err})")

    print("KERNEL_OK")
</pallas_src>

<mosaic_0001>
module attributes {stable_mosaic.version = 11 : i64} {
  func.func @_degree_kernel(%arg0: i32, %arg1: memref<1x128xi32, #tpu.memory_space<vmem>>, %arg2: memref<1x128xbf16, #tpu.memory_space<vmem>>, %arg3: memref<128x1xf32, #tpu.memory_space<vmem>>) attributes {dimension_semantics = [#tpu.dimension_semantics<arbitrary>], iteration_bounds = array<i64: 1>, scalar_prefetch = 0 : i64, scratch_operands = 0 : i64, tpu.core_type = #tpu.core_type<tc>, window_params = [{transform_indices = @transform_0, window_bounds = array<i64: 1, 128>}, {transform_indices = @transform_1, window_bounds = array<i64: 1, 128>}, {pipeline_mode = #tpu.pipeline_mode<synchronous>, transform_indices = @transform_2, window_bounds = array<i64: 128, 1>}]} {
    %c0_i32 = arith.constant 0 : i32
    %0 = arith.cmpi eq, %arg0, %c0_i32 : i32
    %1 = arith.extui %0 : i1 to i32
    %c0_i32_0 = arith.constant 0 : i32
    %2 = arith.cmpi ne, %1, %c0_i32_0 : i32
    scf.if %2 {
      %cst_11 = arith.constant 0.000000e+00 : f32
      %21 = vector.broadcast %cst_11 : f32 to vector<128x1xf32>
      %c0_12 = arith.constant 0 : index
      %c0_13 = arith.constant 0 : index
      %22 = vector.load %arg3[%c0_12, %c0_13] : memref<128x1xf32, #tpu.memory_space<vmem>>, vector<128x1xf32>
      tpu.vector_store %arg3[%c0_12, %c0_13], %21 {strides = array<i32>} : memref<128x1xf32, #tpu.memory_space<vmem>>, vector<128x1xf32>,
    } else {
    }
    %3 = tpu.iota {dimensions = array<i32: 0>} : vector<128x128xi32>
    %c0 = arith.constant 0 : index
    %c0_1 = arith.constant 0 : index
    %4 = vector.load %arg1[%c0, %c0_1] : memref<1x128xi32, #tpu.memory_space<vmem>>, vector<1x128xi32>
    %5 = vector.broadcast %4 : vector<1x128xi32> to vector<128x128xi32>
    %6 = arith.cmpi eq, %3, %5 : vector<128x128xi32>
    %c0_2 = arith.constant 0 : index
    %c0_3 = arith.constant 0 : index
    %7 = vector.load %arg2[%c0_2, %c0_3] : memref<1x128xbf16, #tpu.memory_space<vmem>>, vector<1x128xbf16>
    %8 = arith.extf %7 : vector<1x128xbf16> to vector<1x128xf32>
    %cst = arith.constant 0.000000e+00 : f32
    %9 = vector.shape_cast %8 : vector<1x128xf32> to vector<1x128xf32>
    %10 = vector.broadcast %9 : vector<1x128xf32> to vector<128x128xf32>
    %11 = vector.broadcast %cst : f32 to vector<128x128xf32>
    %12 = arith.select %6, %10, %11 : vector<128x128xi1>, vector<128x128xf32>
    %c0_4 = arith.constant 0 : index
    %c0_5 = arith.constant 0 : index
    %13 = vector.load %arg3[%c0_4, %c0_5] : memref<128x1xf32, #tpu.memory_space<vmem>>, vector<128x1xf32>
    %cst_6 = arith.constant dense<0.000000e+00> : vector<128xf32>
    %14 = vector.multi_reduction <add>, %12, %cst_6 [1] : vector<128x128xf32> to vector<128xf32>
    %15 = vector.shape_cast %14 : vector<128xf32> to vector<128x1xf32>
    %16 = arith.addf %13, %15 : vector<128x1xf32>
    %c0_7 = arith.constant 0 : index
    %c0_8 = arith.constant 0 : index
    %17 = vector.load %arg3[%c0_7, %c0_8] : memref<128x1xf32, #tpu.memory_space<vmem>>, vector<128x1xf32>
    tpu.vector_store %arg3[%c0_7, %c0_8], %16 {strides = array<i32>} : memref<128x1xf32, #tpu.memory_space<vmem>>, vector<128x1xf32>,
    %c0_i32_9 = arith.constant 0 : i32
    %18 = arith.cmpi eq, %arg0, %c0_i32_9 : i32
    %19 = arith.extui %18 : i1 to i32
    %c0_i32_10 = arith.constant 0 : i32
    %20 = arith.cmpi ne, %19, %c0_i32_10 : i32
    scf.if %20 {
      %c0_11 = arith.constant 0 : index
      %c0_12 = arith.constant 0 : index
      %21 = vector.load %arg3[%c0_11, %c0_12] : memref<128x1xf32, #tpu.memory_space<vmem>>, vector<128x1xf32>
      %cst_13 = arith.constant 0.000000e+00 : f32
      %22 = vector.broadcast %cst_13 : f32 to vector<128x1xf32>
      %23 = arith.cmpf ogt, %21, %22 : vector<128x1xf32>
      %24 = math.rsqrt %21 : vector<128x1xf32>
      %cst_14 = arith.constant 0.000000e+00 : f32
      %25 = vector.broadcast %cst_14 : f32 to vector<128x1xf32>
      %26 = arith.select %23, %24, %25 : vector<128x1xi1>, vector<128x1xf32>
      %c0_15 = arith.constant 0 : index
      %c0_16 = arith.constant 0 : index
      %27 = vector.load %arg3[%c0_15, %c0_16] : memref<128x1xf32, #tpu.memory_space<vmem>>, vector<128x1xf32>
      tpu.vector_store %arg3[%c0_15, %c0_16], %26 {strides = array<i32>} : memref<128x1xf32, #tpu.memory_space<vmem>>, vector<128x1xf32>,
    } else {
    }
    return
  }
  func.func @transform_0(%arg0: i32) -> (i32, i32) {
    %c0_i32 = arith.constant 0 : i32
    %c0_i32_0 = arith.constant 0 : i32
    return %c0_i32, %arg0 : i32, i32
  }
  func.func @transform_1(%arg0: i32) -> (i32, i32) {
    %c0_i32 = arith.constant 0 : i32
    %c0_i32_0 = arith.constant 0 : i32
    return %c0_i32, %arg0 : i32, i32
  }
  func.func @transform_2(%arg0: i32) -> (i32, i32) {
    %c0_i32 = arith.constant 0 : i32
    %c0_i32_0 = arith.constant 0 : i32
    %c0_i32_1 = arith.constant 0 : i32
    return %c0_i32, %c0_i32_0 : i32, i32
  }
}

</mosaic_0001>

<llo_original>
// kernel: tpu_custom_call.1
$region0: #{tpu_custom_call.1}
  #allocation0 [shape = 'u32[]', space=smem, size = 0x4, offset = 0x4, fixed_abs, tag = 'smem constant byte address 0x4 - core index']
  #allocation1 [shape = 'u32[144,128]{1,0:T(1,128)}', space=vmem, size = 0x12000, scoped, tag = 'internal scratch']
  %s0 = inlined_call_operand.hbm [shape: s32[1,128], index: 0, kind: input, shape index: {}]
  %s1 = inlined_call_operand.vmem [shape: bf16[1,128], index: 1, kind: input, shape index: {}]
  %s2 = inlined_call_operand.vmem [shape: f32[128,1], index: 2, kind: output, shape index: {}]
  %s3 = sld [smem:[#allocation0]]
  $region30: #{tpu_custom_call.1} parent=0
    _
  %s5 = ssub.s32 1, %s3
  %s6 = scalar_select 0, %s5, %s3
  $region1: #{tpu_custom_call.1} parent=0
    #allocation2 [shape = 'u8[512]{0}', space=vmem, size = 0x400, scoped, tag = 'input window, operand 0, single buffered']
    #allocation3 [shape = 's32[1]{0}', space=sflag, size = 0x4, scoped, tag = 'scoped memory for tpu_custom_call.1']
    %7 = vsyncpa [#allocation3], 0
    // Predicated region
    $region2: #{tpu_custom_call.1} parent=1 // pred_check
      _
    $region3: #{tpu_custom_call.1} parent=1 // pred_check_branch
      %9 = sbr.rel (0) target = $region5
    $region4: #{tpu_custom_call.1} parent=1 // pred_region
      %s11 = ssub.s32 16, 16
      %12 = vsyncadd [#allocation3], %s11
      %s14 = sshll.u32 [#allocation2], 4
      %s15 = int_to_ptr.vmem [resolvable:$true] %s14
      %17 = dma.hbm_to_vmem [thread:$0]  %s0, 16, %s15, [#allocation3]
    $region5: #{tpu_custom_call.1} parent=1 // pred_fallthru
      _
    // Predicated region
    $region6: #{tpu_custom_call.1} parent=1 // pred_check
      _
    $region7: #{tpu_custom_call.1} parent=1 // pred_check_branch
      %19 = sbr.rel (0) target = $region9
    $region8: #{tpu_custom_call.1} parent=1 // pred_region
      _
    $region9: #{tpu_custom_call.1} parent=1 // pred_fallthru
      _
    // Predicated region
    $region10: #{tpu_custom_call.1} parent=1 // pred_check
      _
    $region11: #{tpu_custom_call.1} parent=1 // pred_check_branch
      %21 = sbr.rel (0) target = $region13
    $region12: #{tpu_custom_call.1} parent=1 // pred_region
      %22 = dma.done [#allocation3], 16
    $region13: #{tpu_custom_call.1} parent=1 // pred_fallthru
      _
    %p23 = scmp.eq.s32.totalorder 0, 0
    // Predicated region
    $region14: #{tpu_custom_call.1} parent=1 // pred_check
      %p24 = pneg %p23
    $region15: #{tpu_custom_call.1} parent=1 // pred_check_branch
      %26 = sbr.rel (%p24) target = $region17
    $region16: #{tpu_custom_call.1} parent=1 // pred_region
      %vm27 = vcmask 7168
      %28 = vst.msk [vmem:[%s2] sm:$0xff] %vm27, 0.0
      %29 = vst.msk [vmem:[%s2 + $0x8] sm:$0xff] %vm27, 0.0
      %30 = vst.msk [vmem:[%s2 + $0x10] sm:$0xff] %vm27, 0.0
      %31 = vst.msk [vmem:[%s2 + $0x18] sm:$0xff] %vm27, 0.0
      %32 = vst.msk [vmem:[%s2 + $0x20] sm:$0xff] %vm27, 0.0
      %33 = vst.msk [vmem:[%s2 + $0x28] sm:$0xff] %vm27, 0.0
      %34 = vst.msk [vmem:[%s2 + $0x30] sm:$0xff] %vm27, 0.0
      %35 = vst.msk [vmem:[%s2 + $0x38] sm:$0xff] %vm27, 0.0
      %36 = vst.msk [vmem:[%s2 + $0x40] sm:$0xff] %vm27, 0.0
      %37 = vst.msk [vmem:[%s2 + $0x48] sm:$0xff] %vm27, 0.0
      %38 = vst.msk [vmem:[%s2 + $0x50] sm:$0xff] %vm27, 0.0
      %39 = vst.msk [vmem:[%s2 + $0x58] sm:$0xff] %vm27, 0.0
      %40 = vst.msk [vmem:[%s2 + $0x60] sm:$0xff] %vm27, 0.0
      %41 = vst.msk [vmem:[%s2 + $0x68] sm:$0xff] %vm27, 0.0
      %42 = vst.msk [vmem:[%s2 + $0x70] sm:$0xff] %vm27, 0.0
      %43 = vst.msk [vmem:[%s2 + $0x78] sm:$0xff] %vm27, 0.0
    $region17: #{tpu_custom_call.1} parent=1 // pred_fallthru
      _
    %v44 = vlaneseq
    %v45 = vshrl.u32 %v44, 7
    %v46 = vadd.s32 %v45, 8
    %v47 = vadd.s32 %v45, 16
    %v48 = vadd.s32 %v45, 24
    %v49 = vadd.s32 %v45, 32
    %v50 = vadd.s32 %v45, 40
    %v51 = vadd.s32 %v45, 48
    %v52 = vadd.s32 %v45, 56
    %v53 = vadd.s32 %v45, 64
    %v54 = vadd.s32 %v45, 72
    %v55 = vadd.s32 %v45, 80
    %v56 = vadd.s32 %v45, 88
    %v57 = vadd.s32 %v45, 96
    %v58 = vadd.s32 %v45, 104
    %v59 = vadd.s32 %v45, 112
    %v60 = vadd.s32 %v45, 120
    %v61 = vld [vmem:[#allocation2] sm:$0x1]
    %v62 = vlaneseq
    %v63 = vshrl.u32 %v62, 7
    %v64 = vsub.s32 0, %v63
    %v65 = vrot.slane %v61, %v64
    %vm66 = vcmp.eq.s32.totalorder %v45, %v65
    %vm67 = vcmp.eq.s32.totalorder %v46, %v65
    %vm68 = vcmp.eq.s32.totalorder %v47, %v65
    %vm69 = vcmp.eq.s32.totalorder %v48, %v65
    %vm70 = vcmp.eq.s32.totalorder %v49, %v65
    %vm71 = vcmp.eq.s32.totalorder %v50, %v65
    %vm72 = vcmp.eq.s32.totalorder %v51, %v65
    %vm73 = vcmp.eq.s32.totalorder %v52, %v65
    %vm74 = vcmp.eq.s32.totalorder %v53, %v65
    %vm75 = vcmp.eq.s32.totalorder %v54, %v65
    %vm76 = vcmp.eq.s32.totalorder %v55, %v65
    %vm77 = vcmp.eq.s32.totalorder %v56, %v65
    %vm78 = vcmp.eq.s32.totalorder %v57, %v65
    %vm79 = vcmp.eq.s32.totalorder %v58, %v65
    %vm80 = vcmp.eq.s32.totalorder %v59, %v65
    %vm81 = vcmp.eq.s32.totalorder %v60, %v65
    %v82 = vld [vmem:[%s1] sm:$0x1]
    %v83 = vunpack.c.l.bf16 %v82
    %v84 = vlaneseq
    %v85 = vshrl.u32 %v84, 7
    %v86 = vsub.s32 0, %v85
    %v87 = vrot.slane %v83, %v86
    %v88 = vsel %vm66, %v87, 0.0
    %v89 = vsel %vm67, %v87, 0.0
    %v90 = vsel %vm68, %v87, 0.0
    %v91 = vsel %vm69, %v87, 0.0
    %v92 = vsel %vm70, %v87, 0.0
    %v93 = vsel %vm71, %v87, 0.0
    %v94 = vsel %vm72, %v87, 0.0
    %v95 = vsel %vm73, %v87, 0.0
    %v96 = vsel %vm74, %v87, 0.0
    %v97 = vsel %vm75, %v87, 0.0
    %v98 = vsel %vm76, %v87, 0.0
    %v99 = vsel %vm77, %v87, 0.0
    %v100 = vsel %vm78, %v87, 0.0
    %v101 = vsel %vm79, %v87, 0.0
    %v102 = vsel %vm80, %v87, 0.0
    %v103 = vsel %vm81, %v87, 0.0
    %v104 = vld [vmem:[%s2] sm:$0xff]
    %v105 = vld [vmem:[%s2 + $0x8] sm:$0xff]
    %v106 = vld [vmem:[%s2 + $0x10] sm:$0xff]
    %v107 = vld [vmem:[%s2 + $0x18] sm:$0xff]
    %v108 = vld [vmem:[%s2 + $0x20] sm:$0xff]
    %v109 = vld [vmem:[%s2 + $0x28] sm:$0xff]
    %v110 = vld [vmem:[%s2 + $0x30] sm:$0xff]
    %v111 = vld [vmem:[%s2 + $0x38] sm:$0xff]
    %v112 = vld [vmem:[%s2 + $0x40] sm:$0xff]
    %v113 = vld [vmem:[%s2 + $0x48] sm:$0xff]
    %v114 = vld [vmem:[%s2 + $0x50] sm:$0xff]
    %v115 = vld [vmem:[%s2 + $0x58] sm:$0xff]
    %v116 = vld [vmem:[%s2 + $0x60] sm:$0xff]
    %v117 = vld [vmem:[%s2 + $0x68] sm:$0xff]
    %v118 = vld [vmem:[%s2 + $0x70] sm:$0xff]
    %v119 = vld [vmem:[%s2 + $0x78] sm:$0xff]
    %120 = vadd.xlane.f32.xlu0 %v88
    %v121 = vpop.xlane.xlu0 %120
    %122 = vadd.xlane.f32.xlu0 %v89
    %v123 = vpop.xlane.xlu0 %122
    %124 = vadd.xlane.f32.xlu0 %v90
    %v125 = vpop.xlane.xlu0 %124
    %126 = vadd.xlane.f32.xlu0 %v91
    %v127 = vpop.xlane.xlu0 %126
    %128 = vadd.xlane.f32.xlu0 %v92
    %v129 = vpop.xlane.xlu0 %128
    %130 = vadd.xlane.f32.xlu0 %v93
    %v131 = vpop.xlane.xlu0 %130
    %132 = vadd.xlane.f32.xlu0 %v94
    %v133 = vpop.xlane.xlu0 %132
    %134 = vadd.xlane.f32.xlu0 %v95
    %v135 = vpop.xlane.xlu0 %134
    %136 = vadd.xlane.f32.xlu0 %v96
    %v137 = vpop.xlane.xlu0 %136
    %138 = vadd.xlane.f32.xlu0 %v97
    %v139 = vpop.xlane.xlu0 %138
    %140 = vadd.xlane.f32.xlu0 %v98
    %v141 = vpop.xlane.xlu0 %140
    %142 = vadd.xlane.f32.xlu0 %v99
    %v143 = vpop.xlane.xlu0 %142
    %144 = vadd.xlane.f32.xlu0 %v100
    %v145 = vpop.xlane.xlu0 %144
    %146 = vadd.xlane.f32.xlu0 %v101
    %v147 = vpop.xlane.xlu0 %146
    %148 = vadd.xlane.f32.xlu0 %v102
    %v149 = vpop.xlane.xlu0 %148
    %150 = vadd.xlane.f32.xlu0 %v103
    %v151 = vpop.xlane.xlu0 %150
    %v152 = vadd.f32 %v104, %v121
    %v153 = vadd.f32 %v105, %v123
    %v154 = vadd.f32 %v106, %v125
    %v155 = vadd.f32 %v107, %v127
    %v156 = vadd.f32 %v108, %v129
    %v157 = vadd.f32 %v109, %v131
    %v158 = vadd.f32 %v110, %v133
    %v159 = vadd.f32 %v111, %v135
    %v160 = vadd.f32 %v112, %v137
    %v161 = vadd.f32 %v113, %v139
    %v162 = vadd.f32 %v114, %v141
    %v163 = vadd.f32 %v115, %v143
    %v164 = vadd.f32 %v116, %v145
    %v165 = vadd.f32 %v117, %v147
    %v166 = vadd.f32 %v118, %v149
    %v167 = vadd.f32 %v119, %v151
    %vm168 = vcmask 7168
    %169 = vst.msk [vmem:[%s2] sm:$0xff] %vm168, %v152
    %170 = vst.msk [vmem:[%s2 + $0x8] sm:$0xff] %vm168, %v153
    %171 = vst.msk [vmem:[%s2 + $0x10] sm:$0xff] %vm168, %v154
    %172 = vst.msk [vmem:[%s2 + $0x18] sm:$0xff] %vm168, %v155
    %173 = vst.msk [vmem:[%s2 + $0x20] sm:$0xff] %vm168, %v156
    %174 = vst.msk [vmem:[%s2 + $0x28] sm:$0xff] %vm168, %v157
    %175 = vst.msk [vmem:[%s2 + $0x30] sm:$0xff] %vm168, %v158
    %176 = vst.msk [vmem:[%s2 + $0x38] sm:$0xff] %vm168, %v159
    %177 = vst.msk [vmem:[%s2 + $0x40] sm:$0xff] %vm168, %v160
    %178 = vst.msk [vmem:[%s2 + $0x48] sm:$0xff] %vm168, %v161
    %179 = vst.msk [vmem:[%s2 + $0x50] sm:$0xff] %vm168, %v162
    %180 = vst.msk [vmem:[%s2 + $0x58] sm:$0xff] %vm168, %v163
    %181 = vst.msk [vmem:[%s2 + $0x60] sm:$0xff] %vm168, %v164
    %182 = vst.msk [vmem:[%s2 + $0x68] sm:$0xff] %vm168, %v165
    %183 = vst.msk [vmem:[%s2 + $0x70] sm:$0xff] %vm168, %v166
    %184 = vst.msk [vmem:[%s2 + $0x78] sm:$0xff] %vm168, %v167
    // Predicated region
    $region18: #{tpu_custom_call.1} parent=1 // pred_check
      %p185 = pneg %p23
    $region19: #{tpu_custom_call.1} parent=1 // pred_check_branch
      %187 = sbr.rel (%p185) target = $region21
    $region20: #{tpu_custom_call.1} parent=1 // pred_region
      %v188 = vld [vmem:[%s2] sm:$0xff]
      %v189 = vld [vmem:[%s2 + $0x8] sm:$0xff]
      %v190 = vld [vmem:[%s2 + $0x10] sm:$0xff]
      %v191 = vld [vmem:[%s2 + $0x18] sm:$0xff]
      %v192 = vld [vmem:[%s2 + $0x20] sm:$0xff]
      %v193 = vld [vmem:[%s2 + $0x28] sm:$0xff]
      %v194 = vld [vmem:[%s2 + $0x30] sm:$0xff]
      %v195 = vld [vmem:[%s2 + $0x38] sm:$0xff]
      %v196 = vld [vmem:[%s2 + $0x40] sm:$0xff]
      %v197 = vld [vmem:[%s2 + $0x48] sm:$0xff]
      %v198 = vld [vmem:[%s2 + $0x50] sm:$0xff]
      %v199 = vld [vmem:[%s2 + $0x58] sm:$0xff]
      %v200 = vld [vmem:[%s2 + $0x60] sm:$0xff]
      %v201 = vld [vmem:[%s2 + $0x68] sm:$0xff]
      %v202 = vld [vmem:[%s2 + $0x70] sm:$0xff]
      %v203 = vld [vmem:[%s2 + $0x78] sm:$0xff]
      %vm204 = vcmp.gt.f32.partialorder %v188, 0.0
      %vm205 = vcmp.gt.f32.partialorder %v189, 0.0
      %vm206 = vcmp.gt.f32.partialorder %v190, 0.0
      %vm207 = vcmp.gt.f32.partialorder %v191, 0.0
      %vm208 = vcmp.gt.f32.partialorder %v192, 0.0
      %vm209 = vcmp.gt.f32.partialorder %v193, 0.0
      %vm210 = vcmp.gt.f32.partialorder %v194, 0.0
      %vm211 = vcmp.gt.f32.partialorder %v195, 0.0
      %vm212 = vcmp.gt.f32.partialorder %v196, 0.0
      %vm213 = vcmp.gt.f32.partialorder %v197, 0.0
      %vm214 = vcmp.gt.f32.partialorder %v198, 0.0
      %vm215 = vcmp.gt.f32.partialorder %v199, 0.0
      %vm216 = vcmp.gt.f32.partialorder %v200, 0.0
      %vm217 = vcmp.gt.f32.partialorder %v201, 0.0
      %vm218 = vcmp.gt.f32.partialorder %v202, 0.0
      %vm219 = vcmp.gt.f32.partialorder %v203, 0.0
      %v220 = vrsqrt.pop %v188
      %v221 = vrsqrt.pop %v189
      %v222 = vrsqrt.pop %v190
      %v223 = vrsqrt.pop %v191
      %v224 = vrsqrt.pop %v192
      %v225 = vrsqrt.pop %v193
      %v226 = vrsqrt.pop %v194
      %v227 = vrsqrt.pop %v195
      %v228 = vrsqrt.pop %v196
      %v229 = vrsqrt.pop %v197
      %v230 = vrsqrt.pop %v198
      %v231 = vrsqrt.pop %v199
      %v232 = vrsqrt.pop %v200
      %v233 = vrsqrt.pop %v201
      %v234 = vrsqrt.pop %v202
      %v235 = vrsqrt.pop %v203
      %v236 = vsel %vm204, %v220, 0.0
      %v237 = vsel %vm205, %v221, 0.0
      %v238 = vsel %vm206, %v222, 0.0
      %v239 = vsel %vm207, %v223, 0.0
      %v240 = vsel %vm208, %v224, 0.0
      %v241 = vsel %vm209, %v225, 0.0
      %v242 = vsel %vm210, %v226, 0.0
      %v243 = vsel %vm211, %v227, 0.0
      %v244 = vsel %vm212, %v228, 0.0
      %v245 = vsel %vm213, %v229, 0.0
      %v246 = vsel %vm214, %v230, 0.0
      %v247 = vsel %vm215, %v231, 0.0
      %v248 = vsel %vm216, %v232, 0.0
      %v249 = vsel %vm217, %v233, 0.0
      %v250 = vsel %vm218, %v234, 0.0
      %v251 = vsel %vm219, %v235, 0.0
      %252 = vst.msk [vmem:[%s2] sm:$0xff] %vm168, %v236
      %253 = vst.msk [vmem:[%s2 + $0x8] sm:$0xff] %vm168, %v237
      %254 = vst.msk [vmem:[%s2 + $0x10] sm:$0xff] %vm168, %v238
      %255 = vst.msk [vmem:[%s2 + $0x18] sm:$0xff] %vm168, %v239
      %256 = vst.msk [vmem:[%s2 + $0x20] sm:$0xff] %vm168, %v240
      %257 = vst.msk [vmem:[%s2 + $0x28] sm:$0xff] %vm168, %v241
      %258 = vst.msk [vmem:[%s2 + $0x30] sm:$0xff] %vm168, %v242
      %259 = vst.msk [vmem:[%s2 + $0x38] sm:$0xff] %vm168, %v243
      %260 = vst.msk [vmem:[%s2 + $0x40] sm:$0xff] %vm168, %v244
      %261 = vst.msk [vmem:[%s2 + $0x48] sm:$0xff] %vm168, %v245
      %262 = vst.msk [vmem:[%s2 + $0x50] sm:$0xff] %vm168, %v246
      %263 = vst.msk [vmem:[%s2 + $0x58] sm:$0xff] %vm168, %v247
      %264 = vst.msk [vmem:[%s2 + $0x60] sm:$0xff] %vm168, %v248
      %265 = vst.msk [vmem:[%s2 + $0x68] sm:$0xff] %vm168, %v249
      %266 = vst.msk [vmem:[%s2 + $0x70] sm:$0xff] %vm168, %v250
      %267 = vst.msk [vmem:[%s2 + $0x78] sm:$0xff] %vm168, %v251
    $region21: #{tpu_custom_call.1} parent=1 // pred_fallthru
      _
    // Predicated region
    $region22: #{tpu_custom_call.1} parent=1 // pred_check
      _
    $region23: #{tpu_custom_call.1} parent=1 // pred_check_branch
      %269 = sbr.rel (0) target = $region25
    $region24: #{tpu_custom_call.1} parent=1 // pred_region
      _
    $region25: #{tpu_custom_call.1} parent=1 // pred_fallthru
      _
    // Predicated region
    $region26: #{tpu_custom_call.1} parent=1 // pred_check
      _
    $region27: #{tpu_custom_call.1} parent=1 // pred_check_branch
      %271 = sbr.rel (0) target = $region29
    $region28: #{tpu_custom_call.1} parent=1 // pred_region
      _
    $region29: #{tpu_custom_call.1} parent=1 // pred_fallthru
      _
    %272 = vsyncpa [#allocation3], 1

</llo_original>
